<compile_context>
chip_gen: v7x
topology: tpu7x:2x2x1
jax: 0.10.0
libtpu: 0.0.40
codegen_flags: <defaults>
</compile_context>

<pallas_src>
import functools

import jax
import jax.numpy as jnp
from jax import lax
from jax.experimental import pallas as pl
from jax.experimental.pallas import tpu as pltpu


def _vmem_limit_bytes(working_set_bytes):
    """2x headroom over the estimated per-step working set, floored at the 16 MiB
    v5e scoped default and capped at v7x's 64 MiB physical VMEM per TensorCore."""
    return int(min(64 * 2**20, max(2 * working_set_bytes, 16 * 2**20)))


# ----------------------------- qkv projection --------------------------------
def _qkv_proj_kernel(x_ref, wq_ref, wk_ref, wv_ref, q_ref, k_ref, v_ref):
    # x: (tm, C); wq/wk/wv: (C, C) VMEM-resident.  Operands stay in the input
    # dtype (bf16 inputs take the bf16 MXU path); accumulation is f32.
    x = x_ref[...]
    q_ref[...] = jnp.dot(x, wq_ref[...], preferred_element_type=jnp.float32).astype(q_ref.dtype)
    k_ref[...] = jnp.dot(x, wk_ref[...], preferred_element_type=jnp.float32).astype(k_ref.dtype)
    v_ref[...] = jnp.dot(x, wv_ref[...], preferred_element_type=jnp.float32).astype(v_ref.dtype)


def qkv_projection(x2d, w_qkv, *, max_tile_m=512):
    """x2d: (M, C), w_qkv: (C, 3C) (already transposed vs torch; qkv_bias=False).

    Returns (q, k, v), each (M, C).  The three (C, C) weight slabs use a constant
    block index so they are fetched once and stay VMEM-resident while the token
    dimension is tiled and pipelined.
    """
    M, C = x2d.shape
    wq = w_qkv[:, :C]
    wk = w_qkv[:, C:2 * C]
    wv = w_qkv[:, 2 * C:]

    tm = M if M <= max_tile_m else max_tile_m       # 512 % 8 == 0; full M is legal
    itm = x2d.dtype.itemsize
    est = 2 * (tm * C * itm + 3 * C * C * itm + 3 * tm * C * itm)

    out = jax.ShapeDtypeStruct((M, C), x2d.dtype)
    x_spec = pl.BlockSpec((tm, C), lambda i: (i, 0))
    w_spec = pl.BlockSpec((C, C), lambda i: (0, 0))   # resident across the grid
    o_spec = pl.BlockSpec((tm, C), lambda i: (i, 0))

    return pl.pallas_call(
        _qkv_proj_kernel,
        out_shape=(out, out, out),
        grid=(pl.cdiv(M, tm),),
        in_specs=[x_spec, w_spec, w_spec, w_spec],
        out_specs=(o_spec, o_spec, o_spec),
        compiler_params=pltpu.CompilerParams(
            dimension_semantics=("parallel",),
            vmem_limit_bytes=_vmem_limit_bytes(est),
        ),
    )(x2d, wq, wk, wv)


# ----------------------- fused attention + output proj -----------------------
def _heads_per_group(num_heads, head_dim):
    """Heads per grid step: slab width hg*head_dim is a multiple of 128 lanes when
    possible (lane-aligned loads, legal BlockSpec), else all heads (slab == C)."""
    if head_dim % 128 == 0:
        return 1
    if 128 % head_dim == 0:
        hg = 128 // head_dim
        if num_heads % hg == 0:
            return hg
    return num_heads


def _attn_proj_kernel(q_ref, k_ref, v_ref, wp_ref, bp_ref,
                      xout_ref, qk_ref, vv_ref, xacc_ref,
                      *, head_dim, heads_per_group, scale):
    """Grid = (batch, head_group); one step = `heads_per_group` heads of one batch.

    q/k/v_ref: (1, N, hg*d) lane-dense slabs in the input dtype.
    wp_ref   : (C, C)  full output-projection weight, VMEM-resident.
    bp_ref   : (1, C)  projection bias.
    xout_ref : (1, N, C) projected output, one lane-dense store per batch element.
    qk_ref   : (1, hg, N, N) softmax(q k^T * scale) for this head group.
    vv_ref   : (1, hg, N, N) softmax(v v^T * scale) for this head group.
    xacc_ref : (N, C) f32 scratch accumulating o @ w_proj over head groups.
    """
    g = pl.program_id(1)
    d = head_dim
    hg = heads_per_group
    gw = hg * d

    @pl.when(g == 0)
    def _():
        xacc_ref[...] = jnp.zeros_like(xacc_ref)

    contract_last = (((1,), (1,)), ((), ()))   # A @ B^T without materializing B^T

    o_parts = []
    for h in range(hg):   # small static unroll (hg = 128 // head_dim for aligned configs)
        q = q_ref[0, :, h * d:(h + 1) * d]     # (N, d), input dtype -> bf16 MXU path
        k = k_ref[0, :, h * d:(h + 1) * d]
        v = v_ref[0, :, h * d:(h + 1) * d]

        # Scores: input-dtype operands, f32 accumulation; scale applied to the
        # f32 scores after the matmul (reference semantics: q @ k^T * scale).
        s = lax.dot_general(q, k, contract_last,
                            preferred_element_type=jnp.float32) * scale
        s = s - jnp.max(s, axis=-1, keepdims=True)
        e = jnp.exp(s)
        p = e * pl.reciprocal(jnp.sum(e, axis=-1, keepdims=True), approx=False)
        qk_ref[0, h] = p.astype(qk_ref.dtype)

        # Per-head context; p cast to v's dtype so the MXU sees matched operands.
        # attn_drop is identity (p=0.0 / eval mode).
        o_parts.append(jnp.dot(p.astype(v.dtype), v,
                               preferred_element_type=jnp.float32))

        sv = lax.dot_general(v, v, contract_last,
                             preferred_element_type=jnp.float32) * scale
        sv = sv - jnp.max(sv, axis=-1, keepdims=True)
        ev = jnp.exp(sv)
        pv = ev * pl.reciprocal(jnp.sum(ev, axis=-1, keepdims=True), approx=False)
        vv_ref[0, h] = pv.astype(vv_ref.dtype)

    # (N, gw) group context assembled in-register, contracted with this group's
    # rows of the resident w_proj and accumulated into the f32 scratch: fused
    # output projection (no HBM round trip of the un-projected context).
    o_grp = o_parts[0] if hg == 1 else jnp.concatenate(o_parts, axis=-1)
    row0 = pl.multiple_of(g * gw, gw)
    wp_rows = wp_ref[pl.ds(row0, gw), :]                     # (gw, C)
    xacc_ref[...] += jnp.dot(o_grp.astype(wp_rows.dtype), wp_rows,
                             preferred_element_type=jnp.float32)

    @pl.when(g == pl.num_programs(1) - 1)
    def _():
        # proj_drop is identity (p=0.0 / eval mode); single lane-dense store.
        xout_ref[0] = (xacc_ref[...]
                       + bp_ref[...].astype(jnp.float32)).astype(xout_ref.dtype)


def attention_pallas(q, k, v, w_proj, b_proj, num_heads, scale, *,
                     out_dtype, attn_map_dtype):
    """q/k/v: (B, N, C), head-major (head h lives in columns [h*d, (h+1)*d)).

    Returns (x_out=(B,N,C), qk=(B,H,N,N), vv=(B,H,N,N)) with the output
    projection fused into the attention kernel's epilogue.
    """
    B, N, C = q.shape
    H = num_heads
    d = C // H
    hg = _heads_per_group(H, d)
    G = H // hg
    gw = hg * d

    kernel = functools.partial(_attn_proj_kernel, head_dim=d,
                               heads_per_group=hg, scale=scale)

    itm = q.dtype.itemsize
    map_itm = jnp.dtype(attn_map_dtype).itemsize
    out_itm = jnp.dtype(out_dtype).itemsize
    est = (2 * (3 * N * gw * itm                 # q/k/v slabs (double-buffered)
                + N * C * out_itm                # x_out block
                + 2 * hg * N * N * map_itm)      # qk / vv blocks
           + C * C * itm + C * itm               # resident w_proj / b_proj
           + N * C * 4)                          # f32 accumulator scratch

    return pl.pallas_call(
        kernel,
        out_shape=(
            jax.ShapeDtypeStruct((B, N, C), out_dtype),
            jax.ShapeDtypeStruct((B, H, N, N), attn_map_dtype),
            jax.ShapeDtypeStruct((B, H, N, N), attn_map_dtype),
        ),
        grid=(B, G),
        in_specs=[
            pl.BlockSpec((1, N, gw), lambda b, g: (b, 0, g)),
            pl.BlockSpec((1, N, gw), lambda b, g: (b, 0, g)),
            pl.BlockSpec((1, N, gw), lambda b, g: (b, 0, g)),
            pl.BlockSpec((C, C), lambda b, g: (0, 0)),       # resident w_proj
            pl.BlockSpec((1, C), lambda b, g: (0, 0)),       # resident b_proj
        ],
        out_specs=(
            pl.BlockSpec((1, N, C), lambda b, g: (b, 0, 0)),     # written at last g
            pl.BlockSpec((1, hg, N, N), lambda b, g: (b, g, 0, 0)),
            pl.BlockSpec((1, hg, N, N), lambda b, g: (b, g, 0, 0)),
        ),
        scratch_shapes=[pltpu.VMEM((N, C), jnp.float32)],
        # TODO(synk): on v7x use pltpu.CORE_PARALLEL / pl.core_map on the batch
        # axis so both TensorCores split the grid (plain "parallel" is a no-op there).
        compiler_params=pltpu.CompilerParams(
            dimension_semantics=("parallel", "arbitrary"),
            vmem_limit_bytes=_vmem_limit_bytes(est),
        ),
    )(q, k, v, w_proj, b_proj.reshape(1, C))


# ------------------------------- forward --------------------------------------
def attention_forward(x, w_qkv, w_proj, b_proj, num_heads, *, attn_map_dtype=None):
    """Forward pass matching Attention.forward.  Returns (x_out, [qk, vv]).

    attn_map_dtype: dtype of the returned qk / vv maps.  Defaults to x.dtype;
    pass jnp.bfloat16 to halve the dominant (B,H,N,N) HBM writeback at ViT scale.
    """
    B, N, C = x.shape
    H = num_heads
    d = C // H
    scale = d ** (-0.5)
    attn_map_dtype = x.dtype if attn_map_dtype is None else attn_map_dtype

    # TODO(synk): for real ViT shapes (e.g. N=197) pad N to a multiple of 8 (ideally
    # 128) here so the per-head matmuls / softmax reductions / stores are unmasked.
    q, k, v = qkv_projection(x.reshape(B * N, C), w_qkv)
    q = q.reshape(B, N, C)
    k = k.reshape(B, N, C)
    v = v.reshape(B, N, C)

    x_out, qk, vv = attention_pallas(q, k, v, w_proj, b_proj, H, scale,
                                     out_dtype=x.dtype,
                                     attn_map_dtype=attn_map_dtype)
    return x_out, [qk, vv]


# ------------------------------ reference --------------------------------------
def _reference_forward(x, w_qkv, w_proj, b_proj, num_heads):
    B, N, C = x.shape
    H = num_heads
    d = C // H
    scale = d ** (-0.5)
    qkv = (x @ w_qkv).reshape(B, N, 3, H, d).transpose(2, 0, 3, 1, 4)
    q, k, v = qkv[0], qkv[1], qkv[2]
    qk = jax.nn.softmax((q @ jnp.swapaxes(k, -2, -1)) * scale, axis=-1)
    vv = jax.nn.softmax((v @ jnp.swapaxes(v, -2, -1)) * scale, axis=-1)
    o = (qk @ v).transpose(0, 2, 1, 3).reshape(B, N, C)
    return o @ w_proj + b_proj, qk, vv


# --------------------------------- main ---------------------------------------
if __name__ == "__main__":
    B, N, C = 2, 8, 32
    num_heads = 8  # head_dim = 4

    key = jax.random.PRNGKey(0)
    k_x, k_qkv, k_pw, k_pb = jax.random.split(key, 4)

    x = jax.random.normal(k_x, (B, N, C), dtype=jnp.float32)
    # weights stored already transposed vs torch: (in_dim, out_dim)
    w_qkv = 0.02 * jax.random.normal(k_qkv, (C, 3 * C), dtype=jnp.float32)
    w_proj = 0.02 * jax.random.normal(k_pw, (C, C), dtype=jnp.float32)
    b_proj = 0.02 * jax.random.normal(k_pb, (C,), dtype=jnp.float32)

    out, (qk, vv) = attention_forward(x, w_qkv, w_proj, b_proj, num_heads)
    jax.block_until_ready((out, qk, vv))

    assert out.shape == (B, N, C)
    assert qk.shape == (B, num_heads, N, N)
    assert vv.shape == (B, num_heads, N, N)

    ref_out, ref_qk, ref_vv = _reference_forward(x, w_qkv, w_proj, b_proj, num_heads)
    assert jnp.allclose(out, ref_out, atol=2e-3, rtol=2e-3)
    assert jnp.allclose(qk, ref_qk, atol=2e-3, rtol=2e-3)
    assert jnp.allclose(vv, ref_vv, atol=2e-3, rtol=2e-3)

    print("KERNEL_OK")
</pallas_src>

<mosaic_0001>
module attributes {stable_mosaic.version = 11 : i64} {
  func.func @_qkv_proj_kernel(%arg0: i32, %arg1: memref<16x32xf32, #tpu.memory_space<vmem>>, %arg2: memref<32x32xf32, #tpu.memory_space<vmem>>, %arg3: memref<32x32xf32, #tpu.memory_space<vmem>>, %arg4: memref<32x32xf32, #tpu.memory_space<vmem>>, %arg5: memref<16x32xf32, #tpu.memory_space<vmem>>, %arg6: memref<16x32xf32, #tpu.memory_space<vmem>>, %arg7: memref<16x32xf32, #tpu.memory_space<vmem>>) attributes {dimension_semantics = [#tpu.dimension_semantics<parallel>], iteration_bounds = array<i64: 1>, scalar_prefetch = 0 : i64, scratch_operands = 0 : i64, tpu.core_type = #tpu.core_type<tc>, window_params = [{transform_indices = @transform_0, window_bounds = array<i64: 16, 32>}, {pipeline_mode = #tpu.pipeline_mode<synchronous>, transform_indices = @transform_1, window_bounds = array<i64: 32, 32>}, {pipeline_mode = #tpu.pipeline_mode<synchronous>, transform_indices = @transform_2, window_bounds = array<i64: 32, 32>}, {pipeline_mode = #tpu.pipeline_mode<synchronous>, transform_indices = @transform_3, window_bounds = array<i64: 32, 32>}, {transform_indices = @transform_4, window_bounds = array<i64: 16, 32>}, {transform_indices = @transform_5, window_bounds = array<i64: 16, 32>}, {transform_indices = @transform_6, window_bounds = array<i64: 16, 32>}]} {
    %c0 = arith.constant 0 : index
    %c0_0 = arith.constant 0 : index
    %0 = vector.load %arg1[%c0, %c0_0] : memref<16x32xf32, #tpu.memory_space<vmem>>, vector<16x32xf32>
    %c0_1 = arith.constant 0 : index
    %c0_2 = arith.constant 0 : index
    %1 = vector.load %arg2[%c0_1, %c0_2] : memref<32x32xf32, #tpu.memory_space<vmem>>, vector<32x32xf32>
    %cst = arith.constant dense<0.000000e+00> : vector<16x32xf32>
    %2 = tpu.matmul %0, %1, %cst {dimension_numbers = #tpu.dot_dimension_numbers<[1], [0], [0], [1], [0, 0, 1, 1], [], []>} : vector<16x32xf32>, vector<32x32xf32>, vector<16x32xf32> -> vector<16x32xf32>
    %c0_3 = arith.constant 0 : index
    %c0_4 = arith.constant 0 : index
    %3 = vector.load %arg5[%c0_3, %c0_4] : memref<16x32xf32, #tpu.memory_space<vmem>>, vector<16x32xf32>
    tpu.vector_store %arg5[%c0_3, %c0_4], %2 {strides = array<i32>} : memref<16x32xf32, #tpu.memory_space<vmem>>, vector<16x32xf32>,
    %c0_5 = arith.constant 0 : index
    %c0_6 = arith.constant 0 : index
    %4 = vector.load %arg3[%c0_5, %c0_6] : memref<32x32xf32, #tpu.memory_space<vmem>>, vector<32x32xf32>
    %cst_7 = arith.constant dense<0.000000e+00> : vector<16x32xf32>
    %5 = tpu.matmul %0, %4, %cst_7 {dimension_numbers = #tpu.dot_dimension_numbers<[1], [0], [0], [1], [0, 0, 1, 1], [], []>} : vector<16x32xf32>, vector<32x32xf32>, vector<16x32xf32> -> vector<16x32xf32>
    %c0_8 = arith.constant 0 : index
    %c0_9 = arith.constant 0 : index
    %6 = vector.load %arg6[%c0_8, %c0_9] : memref<16x32xf32, #tpu.memory_space<vmem>>, vector<16x32xf32>
    tpu.vector_store %arg6[%c0_8, %c0_9], %5 {strides = array<i32>} : memref<16x32xf32, #tpu.memory_space<vmem>>, vector<16x32xf32>,
    %c0_10 = arith.constant 0 : index
    %c0_11 = arith.constant 0 : index
    %7 = vector.load %arg4[%c0_10, %c0_11] : memref<32x32xf32, #tpu.memory_space<vmem>>, vector<32x32xf32>
    %cst_12 = arith.constant dense<0.000000e+00> : vector<16x32xf32>
    %8 = tpu.matmul %0, %7, %cst_12 {dimension_numbers = #tpu.dot_dimension_numbers<[1], [0], [0], [1], [0, 0, 1, 1], [], []>} : vector<16x32xf32>, vector<32x32xf32>, vector<16x32xf32> -> vector<16x32xf32>
    %c0_13 = arith.constant 0 : index
    %c0_14 = arith.constant 0 : index
    %9 = vector.load %arg7[%c0_13, %c0_14] : memref<16x32xf32, #tpu.memory_space<vmem>>, vector<16x32xf32>
    tpu.vector_store %arg7[%c0_13, %c0_14], %8 {strides = array<i32>} : memref<16x32xf32, #tpu.memory_space<vmem>>, vector<16x32xf32>,
    return
  }
  func.func @transform_0(%arg0: i32) -> (i32, i32) {
    %c0_i32 = arith.constant 0 : i32
    %c0_i32_0 = arith.constant 0 : i32
    return %arg0, %c0_i32 : i32, i32
  }
  func.func @transform_1(%arg0: i32) -> (i32, i32) {
    %c0_i32 = arith.constant 0 : i32
    %c0_i32_0 = arith.constant 0 : i32
    %c0_i32_1 = arith.constant 0 : i32
    return %c0_i32, %c0_i32_0 : i32, i32
  }
  func.func @transform_2(%arg0: i32) -> (i32, i32) {
    %c0_i32 = arith.constant 0 : i32
    %c0_i32_0 = arith.constant 0 : i32
    %c0_i32_1 = arith.constant 0 : i32
    return %c0_i32, %c0_i32_0 : i32, i32
  }
  func.func @transform_3(%arg0: i32) -> (i32, i32) {
    %c0_i32 = arith.constant 0 : i32
    %c0_i32_0 = arith.constant 0 : i32
    %c0_i32_1 = arith.constant 0 : i32
    return %c0_i32, %c0_i32_0 : i32, i32
  }
  func.func @transform_4(%arg0: i32) -> (i32, i32) {
    %c0_i32 = arith.constant 0 : i32
    %c0_i32_0 = arith.constant 0 : i32
    return %arg0, %c0_i32 : i32, i32
  }
  func.func @transform_5(%arg0: i32) -> (i32, i32) {
    %c0_i32 = arith.constant 0 : i32
    %c0_i32_0 = arith.constant 0 : i32
    return %arg0, %c0_i32 : i32, i32
  }
  func.func @transform_6(%arg0: i32) -> (i32, i32) {
    %c0_i32 = arith.constant 0 : i32
    %c0_i32_0 = arith.constant 0 : i32
    return %arg0, %c0_i32 : i32, i32
  }
}

</mosaic_0001>

<llo_original>
// kernel: tpu_custom_call.1
$region0: #{tpu_custom_call.1}
  #allocation0 [shape = 'u32[]', space=smem, size = 0x4, offset = 0x4, fixed_abs, tag = 'smem constant byte address 0x4 - core index']
  #allocation1 [shape = 'u32[144,128]{1,0:T(1,128)}', space=vmem, size = 0x12000, scoped, tag = 'internal scratch']
  %s0 = inlined_call_operand.hbm [shape: f32[16,32], index: 0, kind: input, shape index: {}]
  %s1 = inlined_call_operand.hbm [shape: f32[32,32], index: 1, kind: input, shape index: {}]
  %s2 = inlined_call_operand.hbm [shape: f32[32,32], index: 2, kind: input, shape index: {}]
  %s3 = inlined_call_operand.hbm [shape: f32[32,32], index: 3, kind: input, shape index: {}]
  %s4 = inlined_call_operand.hbm [shape: f32[16,32], index: 4, kind: output, shape index: {0}]
  %s5 = inlined_call_operand.hbm [shape: f32[16,32], index: 5, kind: output, shape index: {1}]
  %s6 = inlined_call_operand.hbm [shape: f32[16,32], index: 6, kind: output, shape index: {2}]
  %7 = xla_tuple %s4, %s5, %s6
  %s8 = sld [smem:[#allocation0]]
  $region58: #{tpu_custom_call.1} parent=0
    _
  %s10 = ssub.s32 1, %s8
  %s11 = scalar_select 0, %s10, %s8
  $region1: #{tpu_custom_call.1} parent=0
    #allocation2 [shape = 'u8[8192]{0}', space=vmem, size = 0x2000, scoped, tag = 'input window, operand 0, single buffered']
    #allocation3 [shape = 's32[1]{0}', space=sflag, size = 0x4, scoped, tag = 'scoped memory for tpu_custom_call.1']
    #allocation4 [shape = 's32[1]{0}', space=sflag, size = 0x4, scoped, tag = 'scoped memory for tpu_custom_call.1']
    #allocation5 [shape = 'u8[16384]{0}', space=vmem, size = 0x4000, scoped, tag = 'input window, operand 1, single buffered']
    #allocation6 [shape = 's32[1]{0}', space=sflag, size = 0x4, scoped, tag = 'scoped memory for tpu_custom_call.1']
    #allocation7 [shape = 'u8[16384]{0}', space=vmem, size = 0x4000, scoped, tag = 'input window, operand 2, single buffered']
    #allocation8 [shape = 'u8[16384]{0}', space=vmem, size = 0x4000, scoped, tag = 'input window, operand 3, single buffered']
    #allocation9 [shape = 's32[1]{0}', space=sflag, size = 0x4, scoped, tag = 'scoped memory for tpu_custom_call.1']
    #allocation10 [shape = 'u8[8192]{0}', space=vmem, size = 0x2000, scoped, tag = 'output window, operand 0, single buffered']
    #allocation11 [shape = 'u8[8192]{0}', space=vmem, size = 0x2000, scoped, tag = 'output window, operand 1, single buffered']
    #allocation12 [shape = 's32[1]{0}', space=sflag, size = 0x4, scoped, tag = 'scoped memory for tpu_custom_call.1']
    #allocation13 [shape = 'u8[8192]{0}', space=vmem, size = 0x2000, scoped, tag = 'output window, operand 2, single buffered']
    %12 = vsyncpa [#allocation3], 0
    %13 = vsyncpa [#allocation6], 0
    %14 = vsyncpa [#allocation9], 0
    %15 = vsyncpa [#allocation4], 0
    %16 = vsyncpa [#allocation12], 0
    // Predicated region
    $region2: #{tpu_custom_call.1} parent=1 // pred_check
      _
    $region3: #{tpu_custom_call.1} parent=1 // pred_check_branch
      %18 = sbr.rel (0) target = $region5
    $region4: #{tpu_custom_call.1} parent=1 // pred_region
      %s20 = ssub.s32 256, 256
      %21 = vsyncadd [#allocation3], %s20
      %s22 = sshll.u32 [#allocation2], 4
      %s23 = int_to_ptr.vmem [resolvable:$true] %s22
      %28 = dma.hbm_to_vmem [thread:$0]  %s0, 256, %s23, [#allocation3], 128, 128, 8
    $region5: #{tpu_custom_call.1} parent=1 // pred_fallthru
      _
    // Predicated region
    $region6: #{tpu_custom_call.1} parent=1 // pred_check
      _
    $region7: #{tpu_custom_call.1} parent=1 // pred_check_branch
      %30 = sbr.rel (0) target = $region9
    $region8: #{tpu_custom_call.1} parent=1 // pred_region
      %s32 = ssub.s32 512, 512
      %33 = vsyncadd [#allocation6], %s32
      %s34 = sshll.u32 [#allocation5], 4
      %s35 = int_to_ptr.vmem [resolvable:$true] %s34
      %40 = dma.hbm_to_vmem [thread:$0]  %s1, 512, %s35, [#allocation6], 128, 128, 8
    $region9: #{tpu_custom_call.1} parent=1 // pred_fallthru
      _
    // Predicated region
    $region10: #{tpu_custom_call.1} parent=1 // pred_check
      _
    $region11: #{tpu_custom_call.1} parent=1 // pred_check_branch
      %42 = sbr.rel (0) target = $region13
    $region12: #{tpu_custom_call.1} parent=1 // pred_region
      %s44 = ssub.s32 512, 512
      %45 = vsyncadd [#allocation6], %s44
      %s46 = sshll.u32 [#allocation7], 4
      %s47 = int_to_ptr.vmem [resolvable:$true] %s46
      %52 = dma.hbm_to_vmem [thread:$0]  %s2, 512, %s47, [#allocation6], 128, 128, 8
    $region13: #{tpu_custom_call.1} parent=1 // pred_fallthru
      _
    // Predicated region
    $region14: #{tpu_custom_call.1} parent=1 // pred_check
      _
    $region15: #{tpu_custom_call.1} parent=1 // pred_check_branch
      %54 = sbr.rel (0) target = $region17
    $region16: #{tpu_custom_call.1} parent=1 // pred_region
      %s56 = ssub.s32 512, 512
      %57 = vsyncadd [#allocation9], %s56
      %s58 = sshll.u32 [#allocation8], 4
      %s59 = int_to_ptr.vmem [resolvable:$true] %s58
      %64 = dma.hbm_to_vmem [thread:$0]  %s3, 512, %s59, [#allocation9], 128, 128, 8
    $region17: #{tpu_custom_call.1} parent=1 // pred_fallthru
      _
    // Predicated region
    $region18: #{tpu_custom_call.1} parent=1 // pred_check
      _
    $region19: #{tpu_custom_call.1} parent=1 // pred_check_branch
      %66 = sbr.rel (0) target = $region21
    $region20: #{tpu_custom_call.1} parent=1 // pred_region
      %67 = dma.done [#allocation3], 256
    $region21: #{tpu_custom_call.1} parent=1 // pred_fallthru
      _
    // Predicated region
    $region22: #{tpu_custom_call.1} parent=1 // pred_check
      _
    $region23: #{tpu_custom_call.1} parent=1 // pred_check_branch
      %69 = sbr.rel (0) target = $region25
    $region24: #{tpu_custom_call.1} parent=1 // pred_region
      %70 = dma.done [#allocation6], 512
    $region25: #{tpu_custom_call.1} parent=1 // pred_fallthru
      _
    // Predicated region
    $region26: #{tpu_custom_call.1} parent=1 // pred_check
      _
    $region27: #{tpu_custom_call.1} parent=1 // pred_check_branch
      %72 = sbr.rel (0) target = $region29
    $region28: #{tpu_custom_call.1} parent=1 // pred_region
      %73 = dma.done [#allocation6], 512
    $region29: #{tpu_custom_call.1} parent=1 // pred_fallthru
      _
    // Predicated region
    $region30: #{tpu_custom_call.1} parent=1 // pred_check
      _
    $region31: #{tpu_custom_call.1} parent=1 // pred_check_branch
      %75 = sbr.rel (0) target = $region33
    $region32: #{tpu_custom_call.1} parent=1 // pred_region
      %76 = dma.done [#allocation9], 512
    $region33: #{tpu_custom_call.1} parent=1 // pred_fallthru
      _
    %v77 = vld [vmem:[#allocation2] sm:$0xff]
    %v78 = vld [vmem:[#allocation2 + $0x8] sm:$0xff]
    %v79 = vld [vmem:[#allocation5] sm:$0xff]
    %v80 = vld [vmem:[#allocation5 + $0x8] sm:$0xff]
    %v81 = vld [vmem:[#allocation5 + $0x10] sm:$0xff]
    %v82 = vld [vmem:[#allocation5 + $0x18] sm:$0xff]
    %vm83 = vcmask 261120
    %v85 = vsel %vm83, %v77, 0
    %v88 = vsel %vm83, %v78, 0
    %90 = vmatprep.subr.mxu0 0.0
    %91 = vmatpush1.msra.mxu0 %v79
    %92 = vmatprep.subr.mxu0 0.0
    %93 = vmatpush1.msra.mxu0 %v80
    %94 = vmatprep.subr.mxu0 0.0
    %95 = vmatpush1.msra.mxu0 %v81
    %96 = vmatprep.subr.mxu0 0.0
    %97 = vmatpush1.msra.mxu0 %v82
    %98 = vmatprep.subr.mxu0 0.0
    %99 = vmatpush1.msra.mxu0 0.0
    %100 = vmatprep.subr.mxu0 0.0
    %101 = vmatpush1.msra.mxu0 0.0
    %102 = vmatprep.subr.mxu0 0.0
    %103 = vmatpush1.msra.mxu0 0.0
    %104 = vmatprep.subr.mxu0 0.0
    %105 = vmatpush1.msra.mxu0 0.0
    %106 = vmatprep.subr.mxu0 0.0
    %107 = vmatpush1.msra.mxu0 0.0
    %108 = vmatprep.subr.mxu0 0.0
    %109 = vmatpush1.msra.mxu0 0.0
    %110 = vmatprep.subr.mxu0 0.0
    %111 = vmatpush1.msra.mxu0 0.0
    %112 = vmatprep.subr.mxu0 0.0
    %113 = vmatpush1.msra.mxu0 0.0
    %114 = vmatprep.subr.mxu0 0.0
    %115 = vmatpush1.msra.mxu0 0.0
    %116 = vmatprep.subr.mxu0 0.0
    %117 = vmatpush1.msra.mxu0 0.0
    %118 = vmatprep.subr.mxu0 0.0
    %119 = vmatpush1.msra.mxu0 0.0
    %120 = vmatprep.subr.mxu0 0.0
    %121 = vmatpush1.msra.mxu0 0.0
    %122 = vmatprep.subr.mxu0 0.0
    %123 = vmatpush1.msra.mxu0 0.0
    %124 = vmatprep.subr.mxu0 0.0
    %125 = vmatpush1.msra.mxu0 0.0
    %126 = vmatprep.subr.mxu0 0.0
    %127 = vmatpush1.msra.mxu0 0.0
    %128 = vmatprep.subr.mxu0 0.0
    %129 = vmatpush1.msra.mxu0 0.0
    %130 = vmatprep.subr.mxu0 0.0
    %131 = vmatpush1.msra.mxu0 0.0
    %132 = vmatprep.subr.mxu0 0.0
    %133 = vmatpush1.msra.mxu0 0.0
    %134 = vmatprep.subr.mxu0 0.0
    %135 = vmatpush1.msra.mxu0 0.0
    %136 = vmatprep.subr.mxu0 0.0
    %137 = vmatpush1.msra.mxu0 0.0
    %138 = vmatprep.subr.mxu0 0.0
    %139 = vmatpush1.msra.mxu0 0.0
    %140 = vmatprep.subr.mxu0 0.0
    %141 = vmatpush1.msra.mxu0 0.0
    %142 = vmatprep.subr.mxu0 0.0
    %143 = vmatpush1.msra.mxu0 0.0
    %144 = vmatprep.subr.mxu0 0.0
    %145 = vmatpush1.msra.mxu0 0.0
    %146 = vmatprep.subr.mxu0 0.0
    %147 = vmatpush1.msra.mxu0 0.0
    %148 = vmatprep.subr.mxu0 0.0
    %149 = vmatpush1.msra.mxu0 0.0
    %150 = vmatprep.subr.mxu0 0.0
    %151 = vmatpush1.msra.mxu0 0.0
    %152 = vmatprep.subr.mxu0 0.0
    %153 = vmatpush1.msra.mxu0 0.0
    %154 = vmatprep.mubr.f32.mxu0 0.0
    %155 = vmatmul.mubr.f32.gmra.mrb[0].mxu0 %v85
    %v156 = vpop.f32.mrb[0].mxu0
    %v157 = vadd.f32 0.0, %v156
    %v158 = vpop.f32.mrb[0].mxu0
    %159 = vmatprep.mubr.f32.mxu0 0.0
    %160 = vmatmul.mubr.f32.gmra.mrb[0].mxu0 %v88
    %v161 = vpop.f32.mrb[0].mxu0
    %v162 = vadd.f32 0.0, %v161
    %v163 = vpop.f32.mrb[0].mxu0
    %164 = vdwg.mxu0
    %165 = vst.msk [vmem:[#allocation10] sm:$0xff] %vm83, %v157
    %166 = vst.msk [vmem:[#allocation10 + $0x8] sm:$0xff] %vm83, %v162
    %v167 = vld [vmem:[#allocation7] sm:$0xff]
    %v168 = vld [vmem:[#allocation7 + $0x8] sm:$0xff]
    %v169 = vld [vmem:[#allocation7 + $0x10] sm:$0xff]
    %v170 = vld [vmem:[#allocation7 + $0x18] sm:$0xff]
    %171 = vmatprep.subr.mxu0 0.0
    %172 = vmatpush1.msra.mxu0 %v167
    %173 = vmatprep.subr.mxu0 0.0
    %174 = vmatpush1.msra.mxu0 %v168
    %175 = vmatprep.subr.mxu0 0.0
    %176 = vmatpush1.msra.mxu0 %v169
    %177 = vmatprep.subr.mxu0 0.0
    %178 = vmatpush1.msra.mxu0 %v170
    %179 = vmatprep.subr.mxu0 0.0
    %180 = vmatpush1.msra.mxu0 0.0
    %181 = vmatprep.subr.mxu0 0.0
    %182 = vmatpush1.msra.mxu0 0.0
    %183 = vmatprep.subr.mxu0 0.0
    %184 = vmatpush1.msra.mxu0 0.0
    %185 = vmatprep.subr.mxu0 0.0
    %186 = vmatpush1.msra.mxu0 0.0
    %187 = vmatprep.subr.mxu0 0.0
    %188 = vmatpush1.msra.mxu0 0.0
    %189 = vmatprep.subr.mxu0 0.0
    %190 = vmatpush1.msra.mxu0 0.0
    %191 = vmatprep.subr.mxu0 0.0
    %192 = vmatpush1.msra.mxu0 0.0
    %193 = vmatprep.subr.mxu0 0.0
    %194 = vmatpush1.msra.mxu0 0.0
    %195 = vmatprep.subr.mxu0 0.0
    %196 = vmatpush1.msra.mxu0 0.0
    %197 = vmatprep.subr.mxu0 0.0
    %198 = vmatpush1.msra.mxu0 0.0
    %199 = vmatprep.subr.mxu0 0.0
    %200 = vmatpush1.msra.mxu0 0.0
    %201 = vmatprep.subr.mxu0 0.0
    %202 = vmatpush1.msra.mxu0 0.0
    %203 = vmatprep.subr.mxu0 0.0
    %204 = vmatpush1.msra.mxu0 0.0
    %205 = vmatprep.subr.mxu0 0.0
    %206 = vmatpush1.msra.mxu0 0.0
    %207 = vmatprep.subr.mxu0 0.0
    %208 = vmatpush1.msra.mxu0 0.0
    %209 = vmatprep.subr.mxu0 0.0
    %210 = vmatpush1.msra.mxu0 0.0
    %211 = vmatprep.subr.mxu0 0.0
    %212 = vmatpush1.msra.mxu0 0.0
    %213 = vmatprep.subr.mxu0 0.0
    %214 = vmatpush1.msra.mxu0 0.0
    %215 = vmatprep.subr.mxu0 0.0
    %216 = vmatpush1.msra.mxu0 0.0
    %217 = vmatprep.subr.mxu0 0.0
    %218 = vmatpush1.msra.mxu0 0.0
    %219 = vmatprep.subr.mxu0 0.0
    %220 = vmatpush1.msra.mxu0 0.0
    %221 = vmatprep.subr.mxu0 0.0
    %222 = vmatpush1.msra.mxu0 0.0
    %223 = vmatprep.subr.mxu0 0.0
    %224 = vmatpush1.msra.mxu0 0.0
    %225 = vmatprep.subr.mxu0 0.0
    %226 = vmatpush1.msra.mxu0 0.0
    %227 = vmatprep.subr.mxu0 0.0
    %228 = vmatpush1.msra.mxu0 0.0
    %229 = vmatprep.subr.mxu0 0.0
    %230 = vmatpush1.msra.mxu0 0.0
    %231 = vmatprep.subr.mxu0 0.0
    %232 = vmatpush1.msra.mxu0 0.0
    %233 = vmatprep.subr.mxu0 0.0
    %234 = vmatpush1.msra.mxu0 0.0
    %235 = vmatprep.mubr.f32.mxu0 0.0
    %236 = vmatmul.mubr.f32.gmra.mrb[0].mxu0 %v85
    %v237 = vpop.f32.mrb[0].mxu0
    %v238 = vadd.f32 0.0, %v237
    %v239 = vpop.f32.mrb[0].mxu0
    %240 = vmatprep.mubr.f32.mxu0 0.0
    %241 = vmatmul.mubr.f32.gmra.mrb[0].mxu0 %v88
    %v242 = vpop.f32.mrb[0].mxu0
    %v243 = vadd.f32 0.0, %v242
    %v244 = vpop.f32.mrb[0].mxu0
    %245 = vdwg.mxu0
    %246 = vst.msk [vmem:[#allocation11] sm:$0xff] %vm83, %v238
    %247 = vst.msk [vmem:[#allocation11 + $0x8] sm:$0xff] %vm83, %v243
    %v248 = vld [vmem:[#allocation8] sm:$0xff]
    %v249 = vld [vmem:[#allocation8 + $0x8] sm:$0xff]
    %v250 = vld [vmem:[#allocation8 + $0x10] sm:$0xff]
    %v251 = vld [vmem:[#allocation8 + $0x18] sm:$0xff]
    %252 = vmatprep.subr.mxu0 0.0
    %253 = vmatpush1.msra.mxu0 %v248
    %254 = vmatprep.subr.mxu0 0.0
    %255 = vmatpush1.msra.mxu0 %v249
    %256 = vmatprep.subr.mxu0 0.0
    %257 = vmatpush1.msra.mxu0 %v250
    %258 = vmatprep.subr.mxu0 0.0
    %259 = vmatpush1.msra.mxu0 %v251
    %260 = vmatprep.subr.mxu0 0.0
    %261 = vmatpush1.msra.mxu0 0.0
    %262 = vmatprep.subr.mxu0 0.0
    %263 = vmatpush1.msra.mxu0 0.0
    %264 = vmatprep.subr.mxu0 0.0
    %265 = vmatpush1.msra.mxu0 0.0
    %266 = vmatprep.subr.mxu0 0.0
    %267 = vmatpush1.msra.mxu0 0.0
    %268 = vmatprep.subr.mxu0 0.0
    %269 = vmatpush1.msra.mxu0 0.0
    %270 = vmatprep.subr.mxu0 0.0
    %271 = vmatpush1.msra.mxu0 0.0
    %272 = vmatprep.subr.mxu0 0.0
    %273 = vmatpush1.msra.mxu0 0.0
    %274 = vmatprep.subr.mxu0 0.0
    %275 = vmatpush1.msra.mxu0 0.0
    %276 = vmatprep.subr.mxu0 0.0
    %277 = vmatpush1.msra.mxu0 0.0
    %278 = vmatprep.subr.mxu0 0.0
    %279 = vmatpush1.msra.mxu0 0.0
    %280 = vmatprep.subr.mxu0 0.0
    %281 = vmatpush1.msra.mxu0 0.0
    %282 = vmatprep.subr.mxu0 0.0
    %283 = vmatpush1.msra.mxu0 0.0
    %284 = vmatprep.subr.mxu0 0.0
    %285 = vmatpush1.msra.mxu0 0.0
    %286 = vmatprep.subr.mxu0 0.0
    %287 = vmatpush1.msra.mxu0 0.0
    %288 = vmatprep.subr.mxu0 0.0
    %289 = vmatpush1.msra.mxu0 0.0
    %290 = vmatprep.subr.mxu0 0.0
    %291 = vmatpush1.msra.mxu0 0.0
    %292 = vmatprep.subr.mxu0 0.0
    %293 = vmatpush1.msra.mxu0 0.0
    %294 = vmatprep.subr.mxu0 0.0
    %295 = vmatpush1.msra.mxu0 0.0
    %296 = vmatprep.subr.mxu0 0.0
    %297 = vmatpush1.msra.mxu0 0.0
    %298 = vmatprep.subr.mxu0 0.0
    %299 = vmatpush1.msra.mxu0 0.0
    %300 = vmatprep.subr.mxu0 0.0
    %301 = vmatpush1.msra.mxu0 0.0
    %302 = vmatprep.subr.mxu0 0.0
    %303 = vmatpush1.msra.mxu0 0.0
    %304 = vmatprep.subr.mxu0 0.0
    %305 = vmatpush1.msra.mxu0 0.0
    %306 = vmatprep.subr.mxu0 0.0
    %307 = vmatpush1.msra.mxu0 0.0
    %308 = vmatprep.subr.mxu0 0.0
    %309 = vmatpush1.msra.mxu0 0.0
    %310 = vmatprep.subr.mxu0 0.0
    %311 = vmatpush1.msra.mxu0 0.0
    %312 = vmatprep.subr.mxu0 0.0
    %313 = vmatpush1.msra.mxu0 0.0
    %314 = vmatprep.subr.mxu0 0.0
    %315 = vmatpush1.msra.mxu0 0.0
    %316 = vmatprep.mubr.f32.mxu0 0.0
    %317 = vmatmul.mubr.f32.gmra.mrb[0].mxu0 %v85
    %v318 = vpop.f32.mrb[0].mxu0
    %v319 = vadd.f32 0.0, %v318
    %v320 = vpop.f32.mrb[0].mxu0
    %321 = vmatprep.mubr.f32.mxu0 0.0
    %322 = vmatmul.mubr.f32.gmra.mrb[0].mxu0 %v88
    %v323 = vpop.f32.mrb[0].mxu0
    %v324 = vadd.f32 0.0, %v323
    %v325 = vpop.f32.mrb[0].mxu0
    %326 = vdwg.mxu0
    %327 = vst.msk [vmem:[#allocation13] sm:$0xff] %vm83, %v319
    %328 = vst.msk [vmem:[#allocation13 + $0x8] sm:$0xff] %vm83, %v324
    // Predicated region
    $region34: #{tpu_custom_call.1} parent=1 // pred_check
      _
    $region35: #{tpu_custom_call.1} parent=1 // pred_check_branch
      %330 = sbr.rel (0) target = $region37
    $region36: #{tpu_custom_call.1} parent=1 // pred_region
      %s332 = ssub.s32 256, 256
      %333 = vsyncadd [#allocation4], %s332
      %s334 = sshll.u32 [#allocation10], 4
      %s335 = int_to_ptr.vmem [resolvable:$true] %s334
      %340 = dma.vmem_to_hbm [thread:$0]  %s335, 256, %s4, [#allocation4], 128, 128, 8
    $region37: #{tpu_custom_call.1} parent=1 // pred_fallthru
      _
    // Predicated region
    $region38: #{tpu_custom_call.1} parent=1 // pred_check
      _
    $region39: #{tpu_custom_call.1} parent=1 // pred_check_branch
      %342 = sbr.rel (0) target = $region41
    $region40: #{tpu_custom_call.1} parent=1 // pred_region
      %s344 = ssub.s32 256, 256
      %345 = vsyncadd [#allocation12], %s344
      %s346 = sshll.u32 [#allocation11], 4
      %s347 = int_to_ptr.vmem [resolvable:$true] %s346
      %352 = dma.vmem_to_hbm [thread:$0]  %s347, 256, %s5, [#allocation12], 128, 128, 8
    $region41: #{tpu_custom_call.1} parent=1 // pred_fallthru
      _
    // Predicated region
    $region42: #{tpu_custom_call.1} parent=1 // pred_check
      _
    $region43: #{tpu_custom_call.1} parent=1 // pred_check_branch
      %354 = sbr.rel (0) target = $region45
    $region44: #{tpu_custom_call.1} parent=1 // pred_region
      %s356 = ssub.s32 256, 256
      %357 = vsyncadd [#allocation12], %s356
      %s358 = sshll.u32 [#allocation13], 4
      %s359 = int_to_ptr.vmem [resolvable:$true] %s358
      %364 = dma.vmem_to_hbm [thread:$0]  %s359, 256, %s6, [#allocation12], 128, 128, 8
    $region45: #{tpu_custom_call.1} parent=1 // pred_fallthru
      _
    // Predicated region
    $region46: #{tpu_custom_call.1} parent=1 // pred_check
      _
    $region47: #{tpu_custom_call.1} parent=1 // pred_check_branch
      %366 = sbr.rel (0) target = $region49
    $region48: #{tpu_custom_call.1} parent=1 // pred_region
      %367 = dma.done [#allocation4], 256
    $region49: #{tpu_custom_call.1} parent=1 // pred_fallthru
      _
    // Predicated region
    $region50: #{tpu_custom_call.1} parent=1 // pred_check
      _
    $region51: #{tpu_custom_call.1} parent=1 // pred_check_branch
      %369 = sbr.rel (0) target = $region53
    $region52: #{tpu_custom_call.1} parent=1 // pred_region
      %370 = dma.done [#allocation12], 256
    $region53: #{tpu_custom_call.1} parent=1 // pred_fallthru
      _
    // Predicated region
    $region54: #{tpu_custom_call.1} parent=1 // pred_check
      _
    $region55: #{tpu_custom_call.1} parent=1 // pred_check_branch
      %372 = sbr.rel (0) target = $region57
    $region56: #{tpu_custom_call.1} parent=1 // pred_region
      %373 = dma.done [#allocation12], 256
    $region57: #{tpu_custom_call.1} parent=1 // pred_fallthru
      _
    %374 = vsyncpa [#allocation3], 1
    %375 = vsyncpa [#allocation6], 1
    %376 = vsyncpa [#allocation9], 1
    %377 = vsyncpa [#allocation4], 1
    %378 = vsyncpa [#allocation12], 1

</llo_original>
